<compile_context>
chip_gen: v6e
topology: v6e:2x2x1
jax: 0.10.0
libtpu: 0.0.40
codegen_flags: <defaults>
</compile_context>

<pallas_src>
import jax
import jax.numpy as jnp
from jax.experimental import pallas as pl
from jax.experimental.pallas import tpu as pltpu


def _fusion_kernel(x_ref, w_ref, o_ref):
    # x_ref: (Bb, Mb); w_ref: (1, Mb) -> broadcast multiply over batch rows.
    # Promotion/cast happens here on the VPU (free slots in a memory-bound
    # kernel) so the wrapper never adds an extra HBM pass for dtype casts.
    o_ref[...] = (x_ref[...] * w_ref[...]).astype(o_ref.dtype)


def _sublane_pack(itemsize):
    """Rows per packed vreg sublane group for this element size."""
    if itemsize >= 4:
        return 8
    if itemsize == 2:
        return 16
    return 32


def _chip_params():
    """Return (target_block_bytes, vmem_limit_cap_bytes) per TPU generation."""
    kind = ""
    try:
        kind = jax.devices()[0].device_kind.lower()
    except Exception:
        pass
    if "v7" in kind:
        # ~3.2 TB/s HBM per TC: per-step overhead is relatively larger, so use
        # bigger blocks; stay well under the 64 MiB-per-TC physical VMEM.
        return 6 * 1024 * 1024, 48 * 1024 * 1024
    if "v6" in kind:
        # 128 MiB physical VMEM; 32 MiB is only the scoped default.
        return 4 * 1024 * 1024, 80 * 1024 * 1024
    if "v5" in kind:
        # 16 MiB scoped default -> explicit limit is what makes 2 MiB
        # double-buffered tiles compile; ~820 GB/s HBM already amortizes.
        return 2 * 1024 * 1024, 48 * 1024 * 1024
    return 4 * 1024 * 1024, 32 * 1024 * 1024


def _choose_tile(B, M, itemsize, target_bytes, pack):
    """Pick (Bb, Mb): last dim a multiple of 128 (or full M), second-last a
    multiple of the dtype packing (or full B), with Bb*Mb <= target budget."""
    target_elems = max(pack * 128, target_bytes // itemsize)

    # Lane (last) dim. Ragged last blocks (via pl.cdiv) are padded by Pallas,
    # so interior blocks stay large instead of hunting for a divisor of M.
    lane_budget = max(128, (target_elems // pack // 128) * 128)
    if M % 128 == 0:
        Mb = min(M, lane_budget)
    elif M <= lane_budget:
        Mb = M                       # full-extent lane block (always legal)
    else:
        Mb = lane_budget             # padded ragged last block

    # Sublane (second-last) dim: never overshoot the per-block budget.
    rows = max(1, target_elems // Mb)
    if B <= pack or rows >= B:
        Bb = B                       # full extent (always legal)
    else:
        Bb = max(pack, (rows // pack) * pack)
    return Bb, Mb


def fusion_layer(x, weights, *, force_pallas=False,
                 small_bytes_threshold=256 * 1024):
    """Elementwise x * weights with weights broadcast over batch.

    x:       (B, T, N, D)
    weights: (1, T, N, D)
    returns  (B, T, N, D) in the promoted dtype.
    """
    B, T, N, D = x.shape
    assert weights.shape == (1, T, N, D)
    M = T * N * D

    out_dtype = jnp.result_type(x.dtype, weights.dtype)
    x_item = jnp.dtype(x.dtype).itemsize
    w_item = jnp.dtype(weights.dtype).itemsize
    o_item = jnp.dtype(out_dtype).itemsize

    # Tiny problems: a standalone pallas_call's launch + single-step overhead
    # dwarfs the multiply, and XLA fuses the broadcast multiply for free.
    if not force_pallas and B * M * o_item < small_bytes_threshold:
        return (x * weights).astype(out_dtype)

    target_bytes, vmem_cap = _chip_params()
    pack = _sublane_pack(min(x_item, o_item))
    Bb, Mb = _choose_tile(B, M, max(x_item, o_item), target_bytes, pack)

    # Guarantee >= 2 grid steps along a "parallel" axis so both v7x
    # TensorCores get work; harmless elsewhere (~0.35 us extra step).
    if pl.cdiv(M, Mb) * pl.cdiv(B, Bb) < 2:
        if Mb % 256 == 0:
            Mb //= 2
        elif Bb % (2 * pack) == 0:
            Bb //= 2

    # M axis outermost: the weight block index (0, mi) is constant across the
    # inner batch steps, so Pallas skips its re-DMA (fetched once per M tile).
    grid = (pl.cdiv(M, Mb), pl.cdiv(B, Bb))

    x2 = x.reshape(B, M)             # row-major flatten: free layout view
    w2 = weights.reshape(1, M)

    x_spec = pl.BlockSpec((Bb, Mb), lambda mi, bi: (bi, mi))
    w_spec = pl.BlockSpec((1, Mb), lambda mi, bi: (0, mi))
    o_spec = pl.BlockSpec((Bb, Mb), lambda mi, bi: (bi, mi))

    # Double-buffered working set of the *actual* chosen blocks, plus headroom,
    # capped per generation (well under physical VMEM).
    footprint = 2 * Bb * Mb * (x_item + o_item) + 2 * Mb * w_item
    vmem_limit = int(min(vmem_cap,
                         max(4 * 1024 * 1024, footprint + 2 * 1024 * 1024)))

    out2 = pl.pallas_call(
        _fusion_kernel,
        out_shape=jax.ShapeDtypeStruct((B, M), out_dtype),
        grid=grid,
        in_specs=[x_spec, w_spec],
        out_specs=o_spec,
        compiler_params=pltpu.CompilerParams(
            dimension_semantics=("parallel", "parallel"),
            vmem_limit_bytes=vmem_limit,
        ),
    )(x2, w2)

    return out2.reshape(B, T, N, D)


if __name__ == "__main__":
    # Small shapes consistent with the module: batch=2, out_window=8, n=16, out_dim=32.
    B, T, N, D = 2, 8, 16, 32
    key = jax.random.PRNGKey(0)
    kx, kw = jax.random.split(key)

    x = jax.random.normal(kx, (B, T, N, D), dtype=jnp.float32)
    # Deterministic parameter init (torch.FloatTensor is uninitialized memory;
    # we use a deterministic normal init instead).
    weights = jax.random.normal(kw, (1, T, N, D), dtype=jnp.float32)

    # force_pallas=True so the demo exercises the Pallas kernel even at this
    # tiny size (the default path would take the fused pure-jnp fast path).
    out = fusion_layer(x, weights, force_pallas=True)
    out = jax.block_until_ready(out)

    # Reference check against plain JAX broadcast multiply.
    ref = x * weights
    assert out.shape == ref.shape
    assert jnp.allclose(out, ref, atol=1e-6), "mismatch vs reference"

    # Also sanity-check the small-input fast path.
    out_fast = jax.block_until_ready(fusion_layer(x, weights))
    assert jnp.allclose(out_fast, ref, atol=1e-6), "fast path mismatch"

    print("KERNEL_OK")
</pallas_src>

<mosaic_0001>
module attributes {stable_mosaic.version = 11 : i64} {
  func.func @_fusion_kernel(%arg0: i32, %arg1: i32, %arg2: memref<2x2048xf32, #tpu.memory_space<vmem>>, %arg3: memref<1x2048xf32, #tpu.memory_space<vmem>>, %arg4: memref<2x2048xf32, #tpu.memory_space<vmem>>) attributes {dimension_semantics = [#tpu.dimension_semantics<parallel>, #tpu.dimension_semantics<parallel>], iteration_bounds = array<i64: 2, 1>, scalar_prefetch = 0 : i64, scratch_operands = 0 : i64, tpu.core_type = #tpu.core_type<tc>, window_params = [{transform_indices = @transform_0, window_bounds = array<i64: 2, 2048>}, {transform_indices = @transform_1, window_bounds = array<i64: 1, 2048>}, {transform_indices = @transform_2, window_bounds = array<i64: 2, 2048>}]} {
    %c0 = arith.constant 0 : index
    %c0_0 = arith.constant 0 : index
    %0 = vector.load %arg2[%c0, %c0_0] : memref<2x2048xf32, #tpu.memory_space<vmem>>, vector<2x2048xf32>
    %c0_1 = arith.constant 0 : index
    %c0_2 = arith.constant 0 : index
    %1 = vector.load %arg3[%c0_1, %c0_2] : memref<1x2048xf32, #tpu.memory_space<vmem>>, vector<1x2048xf32>
    %2 = vector.broadcast %1 : vector<1x2048xf32> to vector<2x2048xf32>
    %3 = arith.mulf %0, %2 : vector<2x2048xf32>
    %c0_3 = arith.constant 0 : index
    %c0_4 = arith.constant 0 : index
    %4 = vector.load %arg4[%c0_3, %c0_4] : memref<2x2048xf32, #tpu.memory_space<vmem>>, vector<2x2048xf32>
    tpu.vector_store %arg4[%c0_3, %c0_4], %3 {strides = array<i32>} : memref<2x2048xf32, #tpu.memory_space<vmem>>, vector<2x2048xf32>,
    return
  }
  func.func @transform_0(%arg0: i32, %arg1: i32) -> (i32, i32) {
    %c0_i32 = arith.constant 0 : i32
    return %arg1, %arg0 : i32, i32
  }
  func.func @transform_1(%arg0: i32, %arg1: i32) -> (i32, i32) {
    %c0_i32 = arith.constant 0 : i32
    %c0_i32_0 = arith.constant 0 : i32
    return %c0_i32, %arg0 : i32, i32
  }
  func.func @transform_2(%arg0: i32, %arg1: i32) -> (i32, i32) {
    %c0_i32 = arith.constant 0 : i32
    return %arg1, %arg0 : i32, i32
  }
}

</mosaic_0001>

<llo_original>
// kernel: tpu_custom_call.1
$region0: #{tpu_custom_call.1}
  #allocation0 [shape = 'u32[]', space=smem, size = 0x4, offset = 0x4, fixed_abs, tag = 'smem constant byte address 0x4 - core index']
  #allocation1 [shape = 'u32[144,128]{1,0:T(1,128)}', space=vmem, size = 0x12000, scoped, tag = 'internal scratch']
  %s0 = inlined_call_operand.hbm [shape: f32[2,4096], index: 0, kind: input, shape index: {}]
  %s1 = inlined_call_operand.hbm [shape: f32[1,4096], index: 1, kind: input, shape index: {}]
  %s2 = inlined_call_operand.hbm [shape: f32[2,4096], index: 2, kind: output, shape index: {}]
  %s3 = sld [smem:[#allocation0]]
  $region49: #{tpu_custom_call.1} parent=0
    _
  %s5 = ssub.s32 1, %s3
  %s6 = scalar_select 0, %s5, %s3
  $region1: #{tpu_custom_call.1} parent=0
    #allocation2 [shape = 'u8[32768]{0}', space=vmem, size = 0x8000, scoped, tag = 'input window, operand 0']
    #allocation3 [shape = 's32[2]{0}', space=sflag, size = 0x8, scoped, tag = 'scoped memory for tpu_custom_call.1']
    #allocation4 [shape = 's32[2]{0}', space=sflag, size = 0x8, scoped, tag = 'scoped memory for tpu_custom_call.1']
    #allocation5 [shape = 'u8[16384]{0}', space=vmem, size = 0x4000, scoped, tag = 'input window, operand 1']
    #allocation6 [shape = 's32[2]{0}', space=sflag, size = 0x8, scoped, tag = 'scoped memory for tpu_custom_call.1']
    #allocation7 [shape = 'u8[32768]{0}', space=vmem, size = 0x8000, scoped, tag = 'output window, operand 0']
    %7 = vsyncpa [#allocation3], 0
    %s8 = scalar_lea.sflag [#allocation3], 1
    %9 = vsyncpa %s8, 0
    %10 = vsyncpa [#allocation6], 0
    %s11 = scalar_lea.sflag [#allocation6], 1
    %12 = vsyncpa %s11, 0
    %13 = vsyncpa [#allocation4], 0
    %s14 = scalar_lea.sflag [#allocation4], 1
    %15 = vsyncpa %s14, 0
    loop: start=0, step=1, limit=4
    $region2: #{tpu_custom_call.1} parent=1 // loop_pre_header
      _
    $region3: #{tpu_custom_call.1} parent=1 // loop_header
      %s17 = sphi 0, %s21
      %p18 = scmp.ge.s32.totalorder %s17, 4
      %s24 = sphi 0, %s36
      %s25 = sphi 0, %s32
      %s26 = sphi 0, %s24
      %s27 = sphi 0, %s25
      %s28 = sphi 0, %s26
      %s29 = sphi 0, %s27
      %s41 = sphi 0, %s43
      %s44 = sphi 0, %s41
      %s45 = sphi 0, %s44
      %s61 = sphi 0, %s45
      %s67 = sphi 0, %s69
      %s70 = sphi 0, %s67
      %s71 = sphi 0, %s70
      %s87 = sphi 0, %s71
      %s95 = sphi 0, %s97
      %s98 = sphi 0, %s95
      %s99 = sphi 0, %s98
      %s115 = sphi 0, %s99
    $region4: #{tpu_custom_call.1} parent=1 // loop_header_branch
      %20 = sbr.rel (%p18) target = $region8
    $region5: #{tpu_custom_call.1} parent=1 // loop_body
      %s22 = ssub.s32 %s17, 1
      %s23 = ssub.s32 %s17, 2
      %s30 = sadd.s32 1, %s25
      %p31 = scmp.ge.s32.totalorder %s30, 1
      %s32 = scalar_select %p31, 0, %s30
      %s33 = sadd.s32 1, %s24
      %s34 = scalar_select %p31, %s33, %s24
      %p35 = scmp.ge.s32.totalorder %s34, 2
      %s36 = scalar_select %p35, 0, %s34
      %s37 = ssub.s32 %s25, %s32
      %s38 = ssub.s32 %s24, %s36
      %s39 = sor.u32 %s37, %s38
      %p40 = scmp.eq.s32.totalorder %s39, 0
      %s42 = sadd.s32 %s41, 1
      %s43 = scalar_select %p40, %s41, %s42
      %p46 = pneg %p40
      %p47 = scmp.eq.s32.totalorder %s17, 1
      %p48 = por %p46, %p47
      %p49 = scmp.ne.s32.totalorder %s41, %s44
      %p50 = scmp.eq.s32.totalorder %s17, 0
      %p51 = por %p49, %p50
      %p52 = scmp.ne.s32.totalorder %s41, %s44
      %p53 = scmp.eq.s32.totalorder %s22, 1
      %p54 = por %p52, %p53
      %p55 = scmp.ne.s32.totalorder %s44, %s45
      %p56 = scmp.eq.s32.totalorder %s22, 0
      %p57 = por %p55, %p56
      %p58 = scmp.ne.s32.totalorder %s44, %s45
      %p59 = scmp.eq.s32.totalorder %s23, 1
      %p60 = por %p58, %p59
      %p62 = scmp.ne.s32.totalorder %s45, %s61
      %p63 = scmp.eq.s32.totalorder %s23, 0
      %p64 = por %p62, %p63
      %s65 = ssub.s32 %s24, %s36
      %p66 = scmp.eq.s32.totalorder %s65, 0
      %s68 = sadd.s32 %s67, 1
      %s69 = scalar_select %p66, %s67, %s68
      %p72 = pneg %p66
      %p73 = scmp.eq.s32.totalorder %s17, 1
      %p74 = por %p72, %p73
      %p75 = scmp.ne.s32.totalorder %s67, %s70
      %p76 = scmp.eq.s32.totalorder %s17, 0
      %p77 = por %p75, %p76
      %p78 = scmp.ne.s32.totalorder %s67, %s70
      %p79 = scmp.eq.s32.totalorder %s22, 1
      %p80 = por %p78, %p79
      %p81 = scmp.ne.s32.totalorder %s70, %s71
      %p82 = scmp.eq.s32.totalorder %s22, 0
      %p83 = por %p81, %p82
      %p84 = scmp.ne.s32.totalorder %s70, %s71
      %p85 = scmp.eq.s32.totalorder %s23, 1
      %p86 = por %p84, %p85
      %p88 = scmp.ne.s32.totalorder %s71, %s87
      %p89 = scmp.eq.s32.totalorder %s23, 0
      %p90 = por %p88, %p89
      %s91 = ssub.s32 %s25, %s32
      %s92 = ssub.s32 %s24, %s36
      %s93 = sor.u32 %s91, %s92
      %p94 = scmp.eq.s32.totalorder %s93, 0
      %s96 = sadd.s32 %s95, 1
      %s97 = scalar_select %p94, %s95, %s96
      %p100 = pneg %p94
      %p101 = scmp.eq.s32.totalorder %s17, 1
      %p102 = por %p100, %p101
      %p103 = scmp.ne.s32.totalorder %s95, %s98
      %p104 = scmp.eq.s32.totalorder %s17, 0
      %p105 = por %p103, %p104
      %p106 = scmp.ne.s32.totalorder %s95, %s98
      %p107 = scmp.eq.s32.totalorder %s22, 1
      %p108 = por %p106, %p107
      %p109 = scmp.ne.s32.totalorder %s98, %s99
      %p110 = scmp.eq.s32.totalorder %s22, 0
      %p111 = por %p109, %p110
      %p112 = scmp.ne.s32.totalorder %s98, %s99
      %p113 = scmp.eq.s32.totalorder %s23, 1
      %p114 = por %p112, %p113
      %p116 = scmp.ne.s32.totalorder %s99, %s115
      %p117 = scmp.eq.s32.totalorder %s23, 0
      %p118 = por %p116, %p117
      %p119 = scmp.le.s32.totalorder 1, %s17
      %p120 = scmp.lt.s32.totalorder %s17, 3
      %p121 = pnand %p119, %p120
      %p122 = pneg %p121
      // Predicated region
      $region9: #{tpu_custom_call.1} parent=5 // pred_check
        _
      $region10: #{tpu_custom_call.1} parent=5 // pred_check_branch
        %124 = sbr.rel (%p121) target = $region12
      $region11: #{tpu_custom_call.1} parent=5 // pred_region
        %s125 = ssub.s32 %s17, 1
      $region12: #{tpu_custom_call.1} parent=5 // pred_fallthru
        _
      %p126 = scmp.lt.s32.totalorder %s17, 2
      // Predicated region
      $region13: #{tpu_custom_call.1} parent=5 // pred_check
        %p127 = pneg %p126
      $region14: #{tpu_custom_call.1} parent=5 // pred_check_branch
        %129 = sbr.rel (%p127) target = $region16
      $region15: #{tpu_custom_call.1} parent=5 // pred_region
        // Predicated region
        $region17: #{tpu_custom_call.1} parent=15 // pred_check
          %p130 = pneg %p51
        $region18: #{tpu_custom_call.1} parent=15 // pred_check_branch
          %132 = sbr.rel (%p130) target = $region20
        $region19: #{tpu_custom_call.1} parent=15 // pred_region
          %s133 = sand.u32 %s41, 1
          %s134 = scalar_lea.sflag [#allocation3], %s133
          %s135 = sand.u32 %s41, 1
          %s136 = smul.addr %s135, 32
          %s137 = scalar_lea.vmem [#allocation2], %s136
          %s138 = smul.u32 16, %s24
          %s140 = ssub.s32 512, 512
          %141 = vsyncadd %s134, %s140
          %s142 = smul.addr %s25, 32
          %s143 = sadd.s32 %s138, %s142
          %s144 = smul.addr %s143, 32
          %s145 = scalar_lea.hbm %s0, %s144
          %s147 = sshll.u32 %s137, 4
          %s148 = int_to_ptr.vmem [resolvable:$true] %s147
          %150 = dma.hbm_to_vmem [thread:$0]  %s145, 512, %s148, %s134
        $region20: #{tpu_custom_call.1} parent=15 // pred_fallthru
          _
        // Predicated region
        $region21: #{tpu_custom_call.1} parent=15 // pred_check
          %p151 = pneg %p77
        $region22: #{tpu_custom_call.1} parent=15 // pred_check_branch
          %153 = sbr.rel (%p151) target = $region24
        $region23: #{tpu_custom_call.1} parent=15 // pred_region
          %s154 = sand.u32 %s67, 1
          %s155 = scalar_lea.sflag [#allocation6], %s154
          %s156 = sand.u32 %s67, 1
          %s157 = smul.addr %s156, 16
          %s158 = scalar_lea.vmem [#allocation5], %s157
          %s159 = smul.u32 16, %s24
          %s161 = ssub.s32 256, 256
          %162 = vsyncadd %s155, %s161
          %s163 = smul.addr %s159, 16
          %s164 = scalar_lea.hbm %s1, %s163
          %s166 = sshll.u32 %s158, 4
          %s167 = int_to_ptr.vmem [resolvable:$true] %s166
          %169 = dma.hbm_to_vmem [thread:$0]  %s164, 256, %s167, %s155
        $region24: #{tpu_custom_call.1} parent=15 // pred_fallthru
          _
      $region16: #{tpu_custom_call.1} parent=5 // pred_fallthru
        _
      %p170 = scmp.le.s32.totalorder 1, %s17
      %p171 = scmp.lt.s32.totalorder %s17, 3
      %p172 = pnand %p170, %p171
      %p173 = pneg %p172
      // Predicated region
      $region25: #{tpu_custom_call.1} parent=5 // pred_check
        _
      $region26: #{tpu_custom_call.1} parent=5 // pred_check_branch
        %175 = sbr.rel (%p172) target = $region28
      $region27: #{tpu_custom_call.1} parent=5 // pred_region
        %s176 = ssub.s32 %s17, 1
        %s177 = sand.u32 %s44, 1
        %s178 = scalar_lea.sflag [#allocation3], %s177
        %s179 = sand.u32 %s44, 1
        %s180 = smul.addr %s179, 32
        %s181 = scalar_lea.vmem [#allocation2], %s180
        // Predicated region
        $region29: #{tpu_custom_call.1} parent=27 // pred_check
          %p182 = pneg %p57
        $region30: #{tpu_custom_call.1} parent=27 // pred_check_branch
          %184 = sbr.rel (%p182) target = $region32
        $region31: #{tpu_custom_call.1} parent=27 // pred_region
          %185 = dma.done %s178, 512
        $region32: #{tpu_custom_call.1} parent=27 // pred_fallthru
          _
        %s186 = sand.u32 %s70, 1
        %s187 = scalar_lea.sflag [#allocation6], %s186
        %s188 = sand.u32 %s70, 1
        %s189 = smul.addr %s188, 16
        %s190 = scalar_lea.vmem [#allocation5], %s189
        // Predicated region
        $region33: #{tpu_custom_call.1} parent=27 // pred_check
          %p191 = pneg %p83
        $region34: #{tpu_custom_call.1} parent=27 // pred_check_branch
          %193 = sbr.rel (%p191) target = $region36
        $region35: #{tpu_custom_call.1} parent=27 // pred_region
          %194 = dma.done %s187, 256
        $region36: #{tpu_custom_call.1} parent=27 // pred_fallthru
          _
        %s195 = sand.u32 %s44, 1
        %s196 = scalar_lea.sflag [#allocation3], %s195
        %s197 = sand.u32 %s44, 1
        %s198 = smul.addr %s197, 32
        %s199 = scalar_lea.vmem [#allocation2], %s198
        %p200 = pneg %p57
        %p201 = pneg %p54
        %s202 = sand.u32 %s70, 1
        %s203 = scalar_lea.sflag [#allocation6], %s202
        %s204 = sand.u32 %s70, 1
        %s205 = smul.addr %s204, 16
        %s206 = scalar_lea.vmem [#allocation5], %s205
        %p207 = pneg %p83
        %p208 = pneg %p80
        %p209 = pneg %p111
        %p210 = pneg %p108
        %s211 = sand.u32 %s98, 1
        %s212 = scalar_lea.sflag [#allocation4], %s211
        %s213 = sand.u32 %s98, 1
        %s214 = smul.addr %s213, 32
        %s215 = scalar_lea.vmem [#allocation7], %s214
        %s216 = smul.u32 16, %s26
        %s217 = smul.u32 16, %s26
        %s218 = smul.u32 16, %s26
        %v219 = vld [vmem:[%s181] sm:$0xff]
        %v220 = vld [vmem:[%s181 + $0x8] sm:$0xff]
        %v221 = vld [vmem:[%s181 + $0x10] sm:$0xff]
        %v222 = vld [vmem:[%s181 + $0x18] sm:$0xff]
        %v223 = vld [vmem:[%s190] sm:$0xff]
        %v224 = vld [vmem:[%s190 + $0x8] sm:$0xff]
        %v227 = vlaneseq
        %v228 = vshrl.u32 %v227, 7
        %v229 = vsub.s32 0, %v228
        %v230 = vrot.slane %v223, %v229
        %v231 = vlaneseq
        %v232 = vshrl.u32 %v231, 7
        %v233 = vsub.s32 1, %v232
        %v234 = vrot.slane %v223, %v233
        %v235 = vlaneseq
        %v236 = vshrl.u32 %v235, 7
        %v237 = vsub.s32 2, %v236
        %v238 = vrot.slane %v223, %v237
        %v239 = vlaneseq
        %v240 = vshrl.u32 %v239, 7
        %v241 = vsub.s32 3, %v240
        %v242 = vrot.slane %v223, %v241
        %v243 = vlaneseq
        %v244 = vshrl.u32 %v243, 7
        %v245 = vsub.s32 4, %v244
        %v246 = vrot.slane %v223, %v245
        %v247 = vlaneseq
        %v248 = vshrl.u32 %v247, 7
        %v249 = vsub.s32 5, %v248
        %v250 = vrot.slane %v223, %v249
        %v251 = vlaneseq
        %v252 = vshrl.u32 %v251, 7
        %v253 = vsub.s32 6, %v252
        %v254 = vrot.slane %v223, %v253
        %v255 = vlaneseq
        %v256 = vshrl.u32 %v255, 7
        %v257 = vsub.s32 7, %v256
        %v258 = vrot.slane %v223, %v257
        %v259 = vlaneseq
        %v260 = vshrl.u32 %v259, 7
        %v261 = vsub.s32 0, %v260
        %v262 = vrot.slane %v224, %v261
        %v263 = vlaneseq
        %v264 = vshrl.u32 %v263, 7
        %v265 = vsub.s32 1, %v264
        %v266 = vrot.slane %v224, %v265
        %v267 = vlaneseq
        %v268 = vshrl.u32 %v267, 7
        %v269 = vsub.s32 2, %v268
        %v270 = vrot.slane %v224, %v269
        %v271 = vlaneseq
        %v272 = vshrl.u32 %v271, 7
        %v273 = vsub.s32 3, %v272
        %v274 = vrot.slane %v224, %v273
        %v275 = vlaneseq
        %v276 = vshrl.u32 %v275, 7
        %v277 = vsub.s32 4, %v276
        %v278 = vrot.slane %v224, %v277
        %v279 = vlaneseq
        %v280 = vshrl.u32 %v279, 7
        %v281 = vsub.s32 5, %v280
        %v282 = vrot.slane %v224, %v281
        %v283 = vlaneseq
        %v284 = vshrl.u32 %v283, 7
        %v285 = vsub.s32 6, %v284
        %v286 = vrot.slane %v224, %v285
        %v287 = vlaneseq
        %v288 = vshrl.u32 %v287, 7
        %v289 = vsub.s32 7, %v288
        %v290 = vrot.slane %v224, %v289
        %v291 = vcombine.low %v230, %v234
        %v292 = vcombine.low %v238, %v242
        %v294 = vunpack.c.l.s4 1983009808
        %v295 = vunpack.c.0.s8 %v294
        %v296 = vlaneseq
        %v297 = vshrl.u32 %v296, 7
        %v298 = vsub.s32 %v295, %v297
        %v299 = vrot.slane %v291, %v298
        %v301 = vunpack.c.l.s4 1983009808
        %v302 = vunpack.c.0.s8 %v301
        %v303 = vlaneseq
        %v304 = vshrl.u32 %v303, 7
        %v305 = vsub.s32 %v302, %v304
        %v306 = vrot.slane %v292, %v305
        %v307 = vcombine.low %v299, %v306
        %v308 = vcombine.low %v246, %v250
        %v309 = vcombine.low %v254, %v258
        %v311 = vunpack.c.l.s4 1983009808
        %v312 = vunpack.c.0.s8 %v311
        %v313 = vlaneseq
        %v314 = vshrl.u32 %v313, 7
        %v315 = vsub.s32 %v312, %v314
        %v316 = vrot.slane %v308, %v315
        %v318 = vunpack.c.l.s4 1983009808
        %v319 = vunpack.c.0.s8 %v318
        %v320 = vlaneseq
        %v321 = vshrl.u32 %v320, 7
        %v322 = vsub.s32 %v319, %v321
        %v323 = vrot.slane %v309, %v322
        %v324 = vcombine.low %v316, %v323
        %v325 = vcombine.low %v262, %v266
        %v326 = vcombine.low %v270, %v274
        %v328 = vunpack.c.l.s4 1983009808
        %v329 = vunpack.c.0.s8 %v328
        %v330 = vlaneseq
        %v331 = vshrl.u32 %v330, 7
        %v332 = vsub.s32 %v329, %v331
        %v333 = vrot.slane %v325, %v332
        %v335 = vunpack.c.l.s4 1983009808
        %v336 = vunpack.c.0.s8 %v335
        %v337 = vlaneseq
        %v338 = vshrl.u32 %v337, 7
        %v339 = vsub.s32 %v336, %v338
        %v340 = vrot.slane %v326, %v339
        %v341 = vcombine.low %v333, %v340
        %v342 = vcombine.low %v278, %v282
        %v343 = vcombine.low %v286, %v290
        %v345 = vunpack.c.l.s4 1983009808
        %v346 = vunpack.c.0.s8 %v345
        %v347 = vlaneseq
        %v348 = vshrl.u32 %v347, 7
        %v349 = vsub.s32 %v346, %v348
        %v350 = vrot.slane %v342, %v349
        %v352 = vunpack.c.l.s4 1983009808
        %v353 = vunpack.c.0.s8 %v352
        %v354 = vlaneseq
        %v355 = vshrl.u32 %v354, 7
        %v356 = vsub.s32 %v353, %v355
        %v357 = vrot.slane %v343, %v356
        %v358 = vcombine.low %v350, %v357
        %v363 = vmul.f32 %v219, %v307
        %v364 = vmul.f32 %v220, %v324
        %v365 = vmul.f32 %v221, %v341
        %v366 = vmul.f32 %v222, %v358
        %367 = vst [vmem:[%s215] sm:$0xff] %v363
        %368 = vst [vmem:[%s215 + $0x8] sm:$0xff] %v364
        %369 = vst [vmem:[%s215 + $0x10] sm:$0xff] %v365
        %370 = vst [vmem:[%s215 + $0x18] sm:$0xff] %v366
        %s371 = sand.u32 %s98, 1
        %s372 = scalar_lea.sflag [#allocation4], %s371
        %s373 = sand.u32 %s98, 1
        %s374 = smul.addr %s373, 32
        %s375 = scalar_lea.vmem [#allocation7], %s374
        // Predicated region
        $region37: #{tpu_custom_call.1} parent=27 // pred_check
          %p376 = pneg %p108
        $region38: #{tpu_custom_call.1} parent=27 // pred_check_branch
          %378 = sbr.rel (%p376) target = $region40
        $region39: #{tpu_custom_call.1} parent=27 // pred_region
          %s379 = smul.u32 16, %s26
          %s381 = ssub.s32 512, 512
          %382 = vsyncadd %s372, %s381
          %s383 = smul.addr %s27, 32
          %s384 = sadd.s32 %s379, %s383
          %s385 = smul.addr %s384, 32
          %s386 = scalar_lea.hbm %s2, %s385
          %s388 = sshll.u32 %s375, 4
          %s389 = int_to_ptr.vmem [resolvable:$true] %s388
          %391 = dma.vmem_to_hbm [thread:$0]  %s389, 512, %s386, %s372
        $region40: #{tpu_custom_call.1} parent=27 // pred_fallthru
          _
      $region28: #{tpu_custom_call.1} parent=5 // pred_fallthru
        _
      %p392 = scmp.le.s32.totalorder 2, %s17
      // Predicated region
      $region41: #{tpu_custom_call.1} parent=5 // pred_check
        %p393 = pneg %p392
      $region42: #{tpu_custom_call.1} parent=5 // pred_check_branch
        %395 = sbr.rel (%p393) target = $region44
      $region43: #{tpu_custom_call.1} parent=5 // pred_region
        %s396 = ssub.s32 %s17, 2
        // Predicated region
        $region45: #{tpu_custom_call.1} parent=43 // pred_check
          %p397 = pneg %p114
        $region46: #{tpu_custom_call.1} parent=43 // pred_check_branch
          %399 = sbr.rel (%p397) target = $region48
        $region47: #{tpu_custom_call.1} parent=43 // pred_region
          %s400 = sand.u32 %s99, 1
          %s401 = scalar_lea.sflag [#allocation4], %s400
          %s402 = sand.u32 %s99, 1
          %s403 = smul.addr %s402, 32
          %s404 = scalar_lea.vmem [#allocation7], %s403
          %405 = dma.done %s401, 512
        $region48: #{tpu_custom_call.1} parent=43 // pred_fallthru
          _
      $region44: #{tpu_custom_call.1} parent=5 // pred_fallthru
        _
    $region6: #{tpu_custom_call.1} parent=1 // loop_footer
      %s21 = sadd.s32 1, %s17
    $region7: #{tpu_custom_call.1} parent=1 // loop_footer_branch
      %16 = sbr.rel target = $region3
    $region8: #{tpu_custom_call.1} parent=1 // loop_exit
      _
    %406 = vsyncpa [#allocation3], 1
    %s407 = scalar_lea.sflag [#allocation3], 1
    %408 = vsyncpa %s407, 1
    %409 = vsyncpa [#allocation6], 1
    %s410 = scalar_lea.sflag [#allocation6], 1
    %411 = vsyncpa %s410, 1
    %412 = vsyncpa [#allocation4], 1
    %s413 = scalar_lea.sflag [#allocation4], 1
    %414 = vsyncpa %s413, 1

</llo_original>
